<compile_context>
chip_gen: v7x
topology: tpu7x:2x2x1
jax: 0.10.0
libtpu: 0.0.40
codegen_flags: <defaults>
</compile_context>

<pallas_src>
import math
import jax
import jax.numpy as jnp
from jax.experimental import pallas as pl
from jax.experimental.pallas import tpu as pltpu


def _fused_kernel(x_ref, wq_ref, bq_ref, wk_ref, bk_ref, wf_ref, bf_ref, o_ref):
    """One row tile of: out = ((x@Wq + bq) * (x@Wk + bk)) @ Wf + bf.

    Wq/bq already carry the 1/sqrt(E) scale; Wf/bf are the pre-fused
    linear2(linear1(.)) weights. Dropout is identity (eval mode).
    """
    x = x_ref[...]                                                    # (tm, E)
    q = jnp.dot(x, wq_ref[...], preferred_element_type=jnp.float32) + bq_ref[...]
    k = jnp.dot(x, wk_ref[...], preferred_element_type=jnp.float32) + bk_ref[...]
    attn = q * k                                                      # (tm, E), f32 on VPU
    out = jnp.dot(attn.astype(wf_ref.dtype), wf_ref[...],
                  preferred_element_type=jnp.float32) + bf_ref[...]   # (tm, E)
    o_ref[...] = out.astype(o_ref.dtype)


def model_forward(x, wqkv, bqkv, w1, b1, w2, b2, *, tm=None, compute_dtype=None):
    """x: (B, S, E). Weights stored as (in, out); biases as (1, out)."""
    B, S, E = x.shape
    M = B * S
    out_dtype = x.dtype

    # ---------------- wrapper-side weight preparation (done once by XLA) ---
    scale = 1.0 / math.sqrt(E)
    wq = wqkv[:, 0 * E:1 * E] * scale        # fold 1/sqrt(E) into the q projection
    bq = bqkv[:, 0 * E:1 * E] * scale
    wk = wqkv[:, 1 * E:2 * E]
    bk = bqkv[:, 1 * E:2 * E]
    # V projection (wqkv[:, 2E:3E], bqkv[:, 2E:3E]) is unused by the forward.

    # Fuse linear2(dropout(linear1(.))) -> single (E, E) matmul (dropout = identity, eval).
    wf = w1 @ w2                              # (E, E)
    bf = b1 @ w2 + b2                         # (1, E)

    if compute_dtype is not None:             # e.g. jnp.bfloat16: halves DMA, native MXU dtype
        x = x.astype(compute_dtype)
        wq = wq.astype(compute_dtype)
        wk = wk.astype(compute_dtype)
        wf = wf.astype(compute_dtype)
    # Biases stay f32: they are added to the f32 MXU accumulators.
    bq = bq.astype(jnp.float32)
    bk = bk.astype(jnp.float32)
    bf = bf.astype(jnp.float32)

    # ---------------- row tiling ------------------------------------------
    sub = 16 if jnp.dtype(x.dtype).itemsize == 2 else 8   # sublane alignment
    if tm is None:
        tm = min(512, M)          # large tiles amortize the ~0.35us/step overhead
    tm = max(sub, (tm // sub) * sub)
    M_pad = ((M + tm - 1) // tm) * tm

    x2 = x.reshape(M, E)
    if M_pad != M:
        x2 = jnp.pad(x2, ((0, M_pad - M), (0, 0)))

    grid = (M_pad // tm,)

    # For large E/F variants budget VMEM explicitly (v7x has 64 MiB physical):
    # weights are double-buffered per BlockSpec -> set vmem_limit_bytes if needed.
    out2 = pl.pallas_call(
        _fused_kernel,
        out_shape=jax.ShapeDtypeStruct((M_pad, E), out_dtype),
        grid_spec=pltpu.PrefetchScalarGridSpec(
            num_scalar_prefetch=0,
            grid=grid,
            in_specs=[
                pl.BlockSpec((tm, E), lambda i: (i, 0)),   # x rows
                pl.BlockSpec((E, E), lambda i: (0, 0)),    # Wq (scaled)
                pl.BlockSpec((1, E), lambda i: (0, 0)),    # bq (scaled)
                pl.BlockSpec((E, E), lambda i: (0, 0)),    # Wk
                pl.BlockSpec((1, E), lambda i: (0, 0)),    # bk
                pl.BlockSpec((E, E), lambda i: (0, 0)),    # Wf = W1 @ W2
                pl.BlockSpec((1, E), lambda i: (0, 0)),    # bf = b1 @ W2 + b2
            ],
            out_specs=pl.BlockSpec((tm, E), lambda i: (i, 0)),
        ),
        compiler_params=pltpu.CompilerParams(
            dimension_semantics=("parallel",)),            # row tiles shard across TCs (v7x)
    )(x2, wq, bq, wk, bk, wf, bf)

    return out2[:M].reshape(B, S, E)


def reference_forward(x, wqkv, bqkv, w1, b1, w2, b2):
    """Unfused pure-JAX reference matching the PyTorch forward (eval mode)."""
    E = x.shape[-1]
    qkv = x @ wqkv + bqkv
    q = qkv[..., 0 * E:1 * E]
    k = qkv[..., 1 * E:2 * E]
    out = q * k / math.sqrt(E)
    out = out @ w1 + b1
    out = out @ w2 + b2
    return out


if __name__ == "__main__":
    # Small shapes consistent with the module: embed_dim=32, dim_feedforward=64.
    # (The PyTorch spec's Linear1 is declared with in_features=3*embed_dim but is
    #  fed an embed_dim-wide tensor; as in the previous runnable version we use
    #  a consistent E -> F linear1.)
    B, S, E, F_dim = 2, 8, 32, 64
    key = jax.random.PRNGKey(0)
    k_x, k_wq, k_bq, k_w1, k_b1, k_w2, k_b2 = jax.random.split(key, 7)

    x1 = jax.random.normal(k_x, (B, S, E), dtype=jnp.float32)

    def init(k, shape, fan_in):
        bound = 1.0 / math.sqrt(fan_in)
        return jax.random.uniform(k, shape, jnp.float32, -bound, bound)

    wqkv = init(k_wq, (E, 3 * E), E)
    bqkv = init(k_bq, (1, 3 * E), E)
    w1 = init(k_w1, (E, F_dim), E)
    b1 = init(k_b1, (1, F_dim), E)
    w2 = init(k_w2, (F_dim, E), F_dim)
    b2 = init(k_b2, (1, E), F_dim)

    # f32 path: checked against the unfused reference (tolerance relaxed slightly
    # because W1@W2 pre-fusion re-associates the summation).
    out = model_forward(x1, wqkv, bqkv, w1, b1, w2, b2)
    out = jax.block_until_ready(out)
    ref = reference_forward(x1, wqkv, bqkv, w1, b1, w2, b2)
    assert out.shape == (B, S, E)
    assert jnp.allclose(out, ref, atol=1e-4, rtol=1e-4), "mismatch vs reference"

    # bf16 compute path (f32 accumulation): smoke test shape / finiteness.
    out_bf16 = model_forward(x1, wqkv, bqkv, w1, b1, w2, b2,
                             compute_dtype=jnp.bfloat16)
    out_bf16 = jax.block_until_ready(out_bf16)
    assert out_bf16.shape == (B, S, E)
    assert bool(jnp.all(jnp.isfinite(out_bf16)))

    print("KERNEL_OK")
</pallas_src>

<mosaic_0001>
module attributes {stable_mosaic.version = 11 : i64} {
  func.func @_fused_kernel(%arg0: i32, %arg1: memref<16x32xf32, #tpu.memory_space<vmem>>, %arg2: memref<32x32xf32, #tpu.memory_space<vmem>>, %arg3: memref<1x32xf32, #tpu.memory_space<vmem>>, %arg4: memref<32x32xf32, #tpu.memory_space<vmem>>, %arg5: memref<1x32xf32, #tpu.memory_space<vmem>>, %arg6: memref<32x32xf32, #tpu.memory_space<vmem>>, %arg7: memref<1x32xf32, #tpu.memory_space<vmem>>, %arg8: memref<16x32xf32, #tpu.memory_space<vmem>>) attributes {dimension_semantics = [#tpu.dimension_semantics<parallel>], iteration_bounds = array<i64: 1>, scalar_prefetch = 0 : i64, scratch_operands = 0 : i64, tpu.core_type = #tpu.core_type<tc>, window_params = [{transform_indices = @transform_0, window_bounds = array<i64: 16, 32>}, {pipeline_mode = #tpu.pipeline_mode<synchronous>, transform_indices = @transform_1, window_bounds = array<i64: 32, 32>}, {pipeline_mode = #tpu.pipeline_mode<synchronous>, transform_indices = @transform_2, window_bounds = array<i64: 1, 32>}, {pipeline_mode = #tpu.pipeline_mode<synchronous>, transform_indices = @transform_3, window_bounds = array<i64: 32, 32>}, {pipeline_mode = #tpu.pipeline_mode<synchronous>, transform_indices = @transform_4, window_bounds = array<i64: 1, 32>}, {pipeline_mode = #tpu.pipeline_mode<synchronous>, transform_indices = @transform_5, window_bounds = array<i64: 32, 32>}, {pipeline_mode = #tpu.pipeline_mode<synchronous>, transform_indices = @transform_6, window_bounds = array<i64: 1, 32>}, {transform_indices = @transform_7, window_bounds = array<i64: 16, 32>}]} {
    %c0 = arith.constant 0 : index
    %c0_0 = arith.constant 0 : index
    %0 = vector.load %arg1[%c0, %c0_0] : memref<16x32xf32, #tpu.memory_space<vmem>>, vector<16x32xf32>
    %c0_1 = arith.constant 0 : index
    %c0_2 = arith.constant 0 : index
    %1 = vector.load %arg2[%c0_1, %c0_2] : memref<32x32xf32, #tpu.memory_space<vmem>>, vector<32x32xf32>
    %cst = arith.constant dense<0.000000e+00> : vector<16x32xf32>
    %2 = tpu.matmul %0, %1, %cst {dimension_numbers = #tpu.dot_dimension_numbers<[1], [0], [0], [1], [0, 0, 1, 1], [], []>} : vector<16x32xf32>, vector<32x32xf32>, vector<16x32xf32> -> vector<16x32xf32>
    %c0_3 = arith.constant 0 : index
    %c0_4 = arith.constant 0 : index
    %3 = vector.load %arg3[%c0_3, %c0_4] : memref<1x32xf32, #tpu.memory_space<vmem>>, vector<1x32xf32>
    %4 = vector.broadcast %3 : vector<1x32xf32> to vector<16x32xf32>
    %5 = arith.addf %2, %4 : vector<16x32xf32>
    %c0_5 = arith.constant 0 : index
    %c0_6 = arith.constant 0 : index
    %6 = vector.load %arg4[%c0_5, %c0_6] : memref<32x32xf32, #tpu.memory_space<vmem>>, vector<32x32xf32>
    %cst_7 = arith.constant dense<0.000000e+00> : vector<16x32xf32>
    %7 = tpu.matmul %0, %6, %cst_7 {dimension_numbers = #tpu.dot_dimension_numbers<[1], [0], [0], [1], [0, 0, 1, 1], [], []>} : vector<16x32xf32>, vector<32x32xf32>, vector<16x32xf32> -> vector<16x32xf32>
    %c0_8 = arith.constant 0 : index
    %c0_9 = arith.constant 0 : index
    %8 = vector.load %arg5[%c0_8, %c0_9] : memref<1x32xf32, #tpu.memory_space<vmem>>, vector<1x32xf32>
    %9 = vector.broadcast %8 : vector<1x32xf32> to vector<16x32xf32>
    %10 = arith.addf %7, %9 : vector<16x32xf32>
    %11 = arith.mulf %5, %10 : vector<16x32xf32>
    %c0_10 = arith.constant 0 : index
    %c0_11 = arith.constant 0 : index
    %12 = vector.load %arg6[%c0_10, %c0_11] : memref<32x32xf32, #tpu.memory_space<vmem>>, vector<32x32xf32>
    %cst_12 = arith.constant dense<0.000000e+00> : vector<16x32xf32>
    %13 = tpu.matmul %11, %12, %cst_12 {dimension_numbers = #tpu.dot_dimension_numbers<[1], [0], [0], [1], [0, 0, 1, 1], [], []>} : vector<16x32xf32>, vector<32x32xf32>, vector<16x32xf32> -> vector<16x32xf32>
    %c0_13 = arith.constant 0 : index
    %c0_14 = arith.constant 0 : index
    %14 = vector.load %arg7[%c0_13, %c0_14] : memref<1x32xf32, #tpu.memory_space<vmem>>, vector<1x32xf32>
    %15 = vector.broadcast %14 : vector<1x32xf32> to vector<16x32xf32>
    %16 = arith.addf %13, %15 : vector<16x32xf32>
    %c0_15 = arith.constant 0 : index
    %c0_16 = arith.constant 0 : index
    %17 = vector.load %arg8[%c0_15, %c0_16] : memref<16x32xf32, #tpu.memory_space<vmem>>, vector<16x32xf32>
    tpu.vector_store %arg8[%c0_15, %c0_16], %16 {strides = array<i32>} : memref<16x32xf32, #tpu.memory_space<vmem>>, vector<16x32xf32>,
    return
  }
  func.func @transform_0(%arg0: i32) -> (i32, i32) {
    %c0_i32 = arith.constant 0 : i32
    %c0_i32_0 = arith.constant 0 : i32
    return %arg0, %c0_i32 : i32, i32
  }
  func.func @transform_1(%arg0: i32) -> (i32, i32) {
    %c0_i32 = arith.constant 0 : i32
    %c0_i32_0 = arith.constant 0 : i32
    %c0_i32_1 = arith.constant 0 : i32
    return %c0_i32, %c0_i32_0 : i32, i32
  }
  func.func @transform_2(%arg0: i32) -> (i32, i32) {
    %c0_i32 = arith.constant 0 : i32
    %c0_i32_0 = arith.constant 0 : i32
    %c0_i32_1 = arith.constant 0 : i32
    return %c0_i32, %c0_i32_0 : i32, i32
  }
  func.func @transform_3(%arg0: i32) -> (i32, i32) {
    %c0_i32 = arith.constant 0 : i32
    %c0_i32_0 = arith.constant 0 : i32
    %c0_i32_1 = arith.constant 0 : i32
    return %c0_i32, %c0_i32_0 : i32, i32
  }
  func.func @transform_4(%arg0: i32) -> (i32, i32) {
    %c0_i32 = arith.constant 0 : i32
    %c0_i32_0 = arith.constant 0 : i32
    %c0_i32_1 = arith.constant 0 : i32
    return %c0_i32, %c0_i32_0 : i32, i32
  }
  func.func @transform_5(%arg0: i32) -> (i32, i32) {
    %c0_i32 = arith.constant 0 : i32
    %c0_i32_0 = arith.constant 0 : i32
    %c0_i32_1 = arith.constant 0 : i32
    return %c0_i32, %c0_i32_0 : i32, i32
  }
  func.func @transform_6(%arg0: i32) -> (i32, i32) {
    %c0_i32 = arith.constant 0 : i32
    %c0_i32_0 = arith.constant 0 : i32
    %c0_i32_1 = arith.constant 0 : i32
    return %c0_i32, %c0_i32_0 : i32, i32
  }
  func.func @transform_7(%arg0: i32) -> (i32, i32) {
    %c0_i32 = arith.constant 0 : i32
    %c0_i32_0 = arith.constant 0 : i32
    return %arg0, %c0_i32 : i32, i32
  }
}

</mosaic_0001>

<llo_original>
// kernel: tpu_custom_call.1
$region0: #{tpu_custom_call.1}
  #allocation0 [shape = 'u32[]', space=smem, size = 0x4, offset = 0x4, fixed_abs, tag = 'smem constant byte address 0x4 - core index']
  #allocation1 [shape = 'u32[144,128]{1,0:T(1,128)}', space=vmem, size = 0x12000, scoped, tag = 'internal scratch']
  %s0 = inlined_call_operand.hbm [shape: f32[16,32], index: 0, kind: input, shape index: {}]
  %s1 = inlined_call_operand.hbm [shape: f32[32,32], index: 1, kind: input, shape index: {}]
  %s2 = inlined_call_operand.vmem [shape: f32[1,32], index: 2, kind: input, shape index: {}]
  %s3 = inlined_call_operand.hbm [shape: f32[32,32], index: 3, kind: input, shape index: {}]
  %s4 = inlined_call_operand.vmem [shape: f32[1,32], index: 4, kind: input, shape index: {}]
  %s5 = inlined_call_operand.hbm [shape: f32[32,32], index: 5, kind: input, shape index: {}]
  %s6 = inlined_call_operand.vmem [shape: f32[1,32], index: 6, kind: input, shape index: {}]
  %s7 = inlined_call_operand.hbm [shape: f32[16,32], index: 7, kind: output, shape index: {}]
  %s8 = sld [smem:[#allocation0]]
  $region54: #{tpu_custom_call.1} parent=0
    _
  %s10 = ssub.s32 1, %s8
  %s11 = scalar_select 0, %s10, %s8
  $region1: #{tpu_custom_call.1} parent=0
    #allocation2 [shape = 'u8[8192]{0}', space=vmem, size = 0x2000, scoped, tag = 'input window, operand 0, single buffered']
    #allocation3 [shape = 's32[1]{0}', space=sflag, size = 0x4, scoped, tag = 'scoped memory for tpu_custom_call.1']
    #allocation4 [shape = 's32[1]{0}', space=sflag, size = 0x4, scoped, tag = 'scoped memory for tpu_custom_call.1']
    #allocation5 [shape = 'u8[16384]{0}', space=vmem, size = 0x4000, scoped, tag = 'input window, operand 1, single buffered']
    #allocation6 [shape = 's32[1]{0}', space=sflag, size = 0x4, scoped, tag = 'scoped memory for tpu_custom_call.1']
    #allocation7 [shape = 'u8[16384]{0}', space=vmem, size = 0x4000, scoped, tag = 'input window, operand 3, single buffered']
    #allocation8 [shape = 'u8[16384]{0}', space=vmem, size = 0x4000, scoped, tag = 'input window, operand 5, single buffered']
    #allocation9 [shape = 's32[1]{0}', space=sflag, size = 0x4, scoped, tag = 'scoped memory for tpu_custom_call.1']
    #allocation10 [shape = 'u8[8192]{0}', space=vmem, size = 0x2000, scoped, tag = 'output window, operand 0, single buffered']
    %12 = vsyncpa [#allocation3], 0
    %13 = vsyncpa [#allocation6], 0
    %14 = vsyncpa [#allocation9], 0
    %15 = vsyncpa [#allocation4], 0
    // Predicated region
    $region2: #{tpu_custom_call.1} parent=1 // pred_check
      _
    $region3: #{tpu_custom_call.1} parent=1 // pred_check_branch
      %17 = sbr.rel (0) target = $region5
    $region4: #{tpu_custom_call.1} parent=1 // pred_region
      %s19 = ssub.s32 256, 256
      %20 = vsyncadd [#allocation3], %s19
      %s21 = sshll.u32 [#allocation2], 4
      %s22 = int_to_ptr.vmem [resolvable:$true] %s21
      %27 = dma.hbm_to_vmem [thread:$0]  %s0, 256, %s22, [#allocation3], 128, 128, 8
    $region5: #{tpu_custom_call.1} parent=1 // pred_fallthru
      _
    // Predicated region
    $region6: #{tpu_custom_call.1} parent=1 // pred_check
      _
    $region7: #{tpu_custom_call.1} parent=1 // pred_check_branch
      %29 = sbr.rel (0) target = $region9
    $region8: #{tpu_custom_call.1} parent=1 // pred_region
      %s31 = ssub.s32 512, 512
      %32 = vsyncadd [#allocation6], %s31
      %s33 = sshll.u32 [#allocation5], 4
      %s34 = int_to_ptr.vmem [resolvable:$true] %s33
      %39 = dma.hbm_to_vmem [thread:$0]  %s1, 512, %s34, [#allocation6], 128, 128, 8
    $region9: #{tpu_custom_call.1} parent=1 // pred_fallthru
      _
    // Predicated region
    $region10: #{tpu_custom_call.1} parent=1 // pred_check
      _
    $region11: #{tpu_custom_call.1} parent=1 // pred_check_branch
      %41 = sbr.rel (0) target = $region13
    $region12: #{tpu_custom_call.1} parent=1 // pred_region
      _
    $region13: #{tpu_custom_call.1} parent=1 // pred_fallthru
      _
    // Predicated region
    $region14: #{tpu_custom_call.1} parent=1 // pred_check
      _
    $region15: #{tpu_custom_call.1} parent=1 // pred_check_branch
      %43 = sbr.rel (0) target = $region17
    $region16: #{tpu_custom_call.1} parent=1 // pred_region
      %s45 = ssub.s32 512, 512
      %46 = vsyncadd [#allocation6], %s45
      %s47 = sshll.u32 [#allocation7], 4
      %s48 = int_to_ptr.vmem [resolvable:$true] %s47
      %53 = dma.hbm_to_vmem [thread:$0]  %s3, 512, %s48, [#allocation6], 128, 128, 8
    $region17: #{tpu_custom_call.1} parent=1 // pred_fallthru
      _
    // Predicated region
    $region18: #{tpu_custom_call.1} parent=1 // pred_check
      _
    $region19: #{tpu_custom_call.1} parent=1 // pred_check_branch
      %55 = sbr.rel (0) target = $region21
    $region20: #{tpu_custom_call.1} parent=1 // pred_region
      _
    $region21: #{tpu_custom_call.1} parent=1 // pred_fallthru
      _
    // Predicated region
    $region22: #{tpu_custom_call.1} parent=1 // pred_check
      _
    $region23: #{tpu_custom_call.1} parent=1 // pred_check_branch
      %57 = sbr.rel (0) target = $region25
    $region24: #{tpu_custom_call.1} parent=1 // pred_region
      %s59 = ssub.s32 512, 512
      %60 = vsyncadd [#allocation9], %s59
      %s61 = sshll.u32 [#allocation8], 4
      %s62 = int_to_ptr.vmem [resolvable:$true] %s61
      %67 = dma.hbm_to_vmem [thread:$0]  %s5, 512, %s62, [#allocation9], 128, 128, 8
    $region25: #{tpu_custom_call.1} parent=1 // pred_fallthru
      _
    // Predicated region
    $region26: #{tpu_custom_call.1} parent=1 // pred_check
      _
    $region27: #{tpu_custom_call.1} parent=1 // pred_check_branch
      %69 = sbr.rel (0) target = $region29
    $region28: #{tpu_custom_call.1} parent=1 // pred_region
      _
    $region29: #{tpu_custom_call.1} parent=1 // pred_fallthru
      _
    // Predicated region
    $region30: #{tpu_custom_call.1} parent=1 // pred_check
      _
    $region31: #{tpu_custom_call.1} parent=1 // pred_check_branch
      %71 = sbr.rel (0) target = $region33
    $region32: #{tpu_custom_call.1} parent=1 // pred_region
      %72 = dma.done [#allocation3], 256
    $region33: #{tpu_custom_call.1} parent=1 // pred_fallthru
      _
    // Predicated region
    $region34: #{tpu_custom_call.1} parent=1 // pred_check
      _
    $region35: #{tpu_custom_call.1} parent=1 // pred_check_branch
      %74 = sbr.rel (0) target = $region37
    $region36: #{tpu_custom_call.1} parent=1 // pred_region
      %75 = dma.done [#allocation6], 512
    $region37: #{tpu_custom_call.1} parent=1 // pred_fallthru
      _
    // Predicated region
    $region38: #{tpu_custom_call.1} parent=1 // pred_check
      _
    $region39: #{tpu_custom_call.1} parent=1 // pred_check_branch
      %77 = sbr.rel (0) target = $region41
    $region40: #{tpu_custom_call.1} parent=1 // pred_region
      %78 = dma.done [#allocation6], 512
    $region41: #{tpu_custom_call.1} parent=1 // pred_fallthru
      _
    // Predicated region
    $region42: #{tpu_custom_call.1} parent=1 // pred_check
      _
    $region43: #{tpu_custom_call.1} parent=1 // pred_check_branch
      %80 = sbr.rel (0) target = $region45
    $region44: #{tpu_custom_call.1} parent=1 // pred_region
      %81 = dma.done [#allocation9], 512
    $region45: #{tpu_custom_call.1} parent=1 // pred_fallthru
      _
    %v82 = vld [vmem:[#allocation2] sm:$0xff]
    %v83 = vld [vmem:[#allocation2 + $0x8] sm:$0xff]
    %v84 = vld [vmem:[#allocation5] sm:$0xff]
    %v85 = vld [vmem:[#allocation5 + $0x8] sm:$0xff]
    %v86 = vld [vmem:[#allocation5 + $0x10] sm:$0xff]
    %v87 = vld [vmem:[#allocation5 + $0x18] sm:$0xff]
    %v88 = vld [vmem:[%s2] sm:$0x1]
    %v90 = vlaneseq
    %v91 = vshrl.u32 %v90, 7
    %v92 = vsub.s32 0, %v91
    %v93 = vrot.slane %v88, %v92
    %vm95 = vcmask 261120
    %v97 = vsel %vm95, %v82, 0
    %v100 = vsel %vm95, %v83, 0
    %102 = vmatprep.subr.mxu0 0.0
    %103 = vmatpush1.msra.mxu0 %v84
    %104 = vmatprep.subr.mxu0 0.0
    %105 = vmatpush1.msra.mxu0 %v85
    %106 = vmatprep.subr.mxu0 0.0
    %107 = vmatpush1.msra.mxu0 %v86
    %108 = vmatprep.subr.mxu0 0.0
    %109 = vmatpush1.msra.mxu0 %v87
    %110 = vmatprep.subr.mxu0 0.0
    %111 = vmatpush1.msra.mxu0 0.0
    %112 = vmatprep.subr.mxu0 0.0
    %113 = vmatpush1.msra.mxu0 0.0
    %114 = vmatprep.subr.mxu0 0.0
    %115 = vmatpush1.msra.mxu0 0.0
    %116 = vmatprep.subr.mxu0 0.0
    %117 = vmatpush1.msra.mxu0 0.0
    %118 = vmatprep.subr.mxu0 0.0
    %119 = vmatpush1.msra.mxu0 0.0
    %120 = vmatprep.subr.mxu0 0.0
    %121 = vmatpush1.msra.mxu0 0.0
    %122 = vmatprep.subr.mxu0 0.0
    %123 = vmatpush1.msra.mxu0 0.0
    %124 = vmatprep.subr.mxu0 0.0
    %125 = vmatpush1.msra.mxu0 0.0
    %126 = vmatprep.subr.mxu0 0.0
    %127 = vmatpush1.msra.mxu0 0.0
    %128 = vmatprep.subr.mxu0 0.0
    %129 = vmatpush1.msra.mxu0 0.0
    %130 = vmatprep.subr.mxu0 0.0
    %131 = vmatpush1.msra.mxu0 0.0
    %132 = vmatprep.subr.mxu0 0.0
    %133 = vmatpush1.msra.mxu0 0.0
    %134 = vmatprep.subr.mxu0 0.0
    %135 = vmatpush1.msra.mxu0 0.0
    %136 = vmatprep.subr.mxu0 0.0
    %137 = vmatpush1.msra.mxu0 0.0
    %138 = vmatprep.subr.mxu0 0.0
    %139 = vmatpush1.msra.mxu0 0.0
    %140 = vmatprep.subr.mxu0 0.0
    %141 = vmatpush1.msra.mxu0 0.0
    %142 = vmatprep.subr.mxu0 0.0
    %143 = vmatpush1.msra.mxu0 0.0
    %144 = vmatprep.subr.mxu0 0.0
    %145 = vmatpush1.msra.mxu0 0.0
    %146 = vmatprep.subr.mxu0 0.0
    %147 = vmatpush1.msra.mxu0 0.0
    %148 = vmatprep.subr.mxu0 0.0
    %149 = vmatpush1.msra.mxu0 0.0
    %150 = vmatprep.subr.mxu0 0.0
    %151 = vmatpush1.msra.mxu0 0.0
    %152 = vmatprep.subr.mxu0 0.0
    %153 = vmatpush1.msra.mxu0 0.0
    %154 = vmatprep.subr.mxu0 0.0
    %155 = vmatpush1.msra.mxu0 0.0
    %156 = vmatprep.subr.mxu0 0.0
    %157 = vmatpush1.msra.mxu0 0.0
    %158 = vmatprep.subr.mxu0 0.0
    %159 = vmatpush1.msra.mxu0 0.0
    %160 = vmatprep.subr.mxu0 0.0
    %161 = vmatpush1.msra.mxu0 0.0
    %162 = vmatprep.subr.mxu0 0.0
    %163 = vmatpush1.msra.mxu0 0.0
    %164 = vmatprep.subr.mxu0 0.0
    %165 = vmatpush1.msra.mxu0 0.0
    %166 = vmatprep.mubr.f32.mxu0 0.0
    %167 = vmatmul.mubr.f32.gmra.mrb[0].mxu0 %v97
    %v168 = vpop.f32.mrb[0].mxu0
    %v169 = vadd.f32 %v93, %v168
    %v170 = vpop.f32.mrb[0].mxu0
    %171 = vmatprep.mubr.f32.mxu0 0.0
    %172 = vmatmul.mubr.f32.gmra.mrb[0].mxu0 %v100
    %v173 = vpop.f32.mrb[0].mxu0
    %v174 = vadd.f32 %v93, %v173
    %v175 = vpop.f32.mrb[0].mxu0
    %176 = vdwg.mxu0
    %v177 = vld [vmem:[#allocation7] sm:$0xff]
    %v178 = vld [vmem:[#allocation7 + $0x8] sm:$0xff]
    %v179 = vld [vmem:[#allocation7 + $0x10] sm:$0xff]
    %v180 = vld [vmem:[#allocation7 + $0x18] sm:$0xff]
    %v181 = vld [vmem:[%s4] sm:$0x1]
    %v183 = vlaneseq
    %v184 = vshrl.u32 %v183, 7
    %v185 = vsub.s32 0, %v184
    %v186 = vrot.slane %v181, %v185
    %188 = vmatprep.subr.mxu0 0.0
    %189 = vmatpush1.msra.mxu0 %v177
    %190 = vmatprep.subr.mxu0 0.0
    %191 = vmatpush1.msra.mxu0 %v178
    %192 = vmatprep.subr.mxu0 0.0
    %193 = vmatpush1.msra.mxu0 %v179
    %194 = vmatprep.subr.mxu0 0.0
    %195 = vmatpush1.msra.mxu0 %v180
    %196 = vmatprep.subr.mxu0 0.0
    %197 = vmatpush1.msra.mxu0 0.0
    %198 = vmatprep.subr.mxu0 0.0
    %199 = vmatpush1.msra.mxu0 0.0
    %200 = vmatprep.subr.mxu0 0.0
    %201 = vmatpush1.msra.mxu0 0.0
    %202 = vmatprep.subr.mxu0 0.0
    %203 = vmatpush1.msra.mxu0 0.0
    %204 = vmatprep.subr.mxu0 0.0
    %205 = vmatpush1.msra.mxu0 0.0
    %206 = vmatprep.subr.mxu0 0.0
    %207 = vmatpush1.msra.mxu0 0.0
    %208 = vmatprep.subr.mxu0 0.0
    %209 = vmatpush1.msra.mxu0 0.0
    %210 = vmatprep.subr.mxu0 0.0
    %211 = vmatpush1.msra.mxu0 0.0
    %212 = vmatprep.subr.mxu0 0.0
    %213 = vmatpush1.msra.mxu0 0.0
    %214 = vmatprep.subr.mxu0 0.0
    %215 = vmatpush1.msra.mxu0 0.0
    %216 = vmatprep.subr.mxu0 0.0
    %217 = vmatpush1.msra.mxu0 0.0
    %218 = vmatprep.subr.mxu0 0.0
    %219 = vmatpush1.msra.mxu0 0.0
    %220 = vmatprep.subr.mxu0 0.0
    %221 = vmatpush1.msra.mxu0 0.0
    %222 = vmatprep.subr.mxu0 0.0
    %223 = vmatpush1.msra.mxu0 0.0
    %224 = vmatprep.subr.mxu0 0.0
    %225 = vmatpush1.msra.mxu0 0.0
    %226 = vmatprep.subr.mxu0 0.0
    %227 = vmatpush1.msra.mxu0 0.0
    %228 = vmatprep.subr.mxu0 0.0
    %229 = vmatpush1.msra.mxu0 0.0
    %230 = vmatprep.subr.mxu0 0.0
    %231 = vmatpush1.msra.mxu0 0.0
    %232 = vmatprep.subr.mxu0 0.0
    %233 = vmatpush1.msra.mxu0 0.0
    %234 = vmatprep.subr.mxu0 0.0
    %235 = vmatpush1.msra.mxu0 0.0
    %236 = vmatprep.subr.mxu0 0.0
    %237 = vmatpush1.msra.mxu0 0.0
    %238 = vmatprep.subr.mxu0 0.0
    %239 = vmatpush1.msra.mxu0 0.0
    %240 = vmatprep.subr.mxu0 0.0
    %241 = vmatpush1.msra.mxu0 0.0
    %242 = vmatprep.subr.mxu0 0.0
    %243 = vmatpush1.msra.mxu0 0.0
    %244 = vmatprep.subr.mxu0 0.0
    %245 = vmatpush1.msra.mxu0 0.0
    %246 = vmatprep.subr.mxu0 0.0
    %247 = vmatpush1.msra.mxu0 0.0
    %248 = vmatprep.subr.mxu0 0.0
    %249 = vmatpush1.msra.mxu0 0.0
    %250 = vmatprep.subr.mxu0 0.0
    %251 = vmatpush1.msra.mxu0 0.0
    %252 = vmatprep.mubr.f32.mxu0 0.0
    %253 = vmatmul.mubr.f32.gmra.mrb[0].mxu0 %v97
    %v254 = vpop.f32.mrb[0].mxu0
    %v255 = vadd.f32 %v186, %v254
    %v256 = vpop.f32.mrb[0].mxu0
    %257 = vmatprep.mubr.f32.mxu0 0.0
    %258 = vmatmul.mubr.f32.gmra.mrb[0].mxu0 %v100
    %v259 = vpop.f32.mrb[0].mxu0
    %v260 = vadd.f32 %v186, %v259
    %v261 = vpop.f32.mrb[0].mxu0
    %262 = vdwg.mxu0
    %v263 = vmul.f32 %v169, %v255
    %v264 = vmul.f32 %v174, %v260
    %v265 = vld [vmem:[#allocation8] sm:$0xff]
    %v266 = vld [vmem:[#allocation8 + $0x8] sm:$0xff]
    %v267 = vld [vmem:[#allocation8 + $0x10] sm:$0xff]
    %v268 = vld [vmem:[#allocation8 + $0x18] sm:$0xff]
    %v269 = vld [vmem:[%s6] sm:$0x1]
    %v271 = vlaneseq
    %v272 = vshrl.u32 %v271, 7
    %v273 = vsub.s32 0, %v272
    %v274 = vrot.slane %v269, %v273
    %v277 = vsel %vm95, %v263, 0
    %v280 = vsel %vm95, %v264, 0
    %282 = vmatprep.subr.mxu0 0.0
    %283 = vmatpush1.msra.mxu0 %v265
    %284 = vmatprep.subr.mxu0 0.0
    %285 = vmatpush1.msra.mxu0 %v266
    %286 = vmatprep.subr.mxu0 0.0
    %287 = vmatpush1.msra.mxu0 %v267
    %288 = vmatprep.subr.mxu0 0.0
    %289 = vmatpush1.msra.mxu0 %v268
    %290 = vmatprep.subr.mxu0 0.0
    %291 = vmatpush1.msra.mxu0 0.0
    %292 = vmatprep.subr.mxu0 0.0
    %293 = vmatpush1.msra.mxu0 0.0
    %294 = vmatprep.subr.mxu0 0.0
    %295 = vmatpush1.msra.mxu0 0.0
    %296 = vmatprep.subr.mxu0 0.0
    %297 = vmatpush1.msra.mxu0 0.0
    %298 = vmatprep.subr.mxu0 0.0
    %299 = vmatpush1.msra.mxu0 0.0
    %300 = vmatprep.subr.mxu0 0.0
    %301 = vmatpush1.msra.mxu0 0.0
    %302 = vmatprep.subr.mxu0 0.0
    %303 = vmatpush1.msra.mxu0 0.0
    %304 = vmatprep.subr.mxu0 0.0
    %305 = vmatpush1.msra.mxu0 0.0
    %306 = vmatprep.subr.mxu0 0.0
    %307 = vmatpush1.msra.mxu0 0.0
    %308 = vmatprep.subr.mxu0 0.0
    %309 = vmatpush1.msra.mxu0 0.0
    %310 = vmatprep.subr.mxu0 0.0
    %311 = vmatpush1.msra.mxu0 0.0
    %312 = vmatprep.subr.mxu0 0.0
    %313 = vmatpush1.msra.mxu0 0.0
    %314 = vmatprep.subr.mxu0 0.0
    %315 = vmatpush1.msra.mxu0 0.0
    %316 = vmatprep.subr.mxu0 0.0
    %317 = vmatpush1.msra.mxu0 0.0
    %318 = vmatprep.subr.mxu0 0.0
    %319 = vmatpush1.msra.mxu0 0.0
    %320 = vmatprep.subr.mxu0 0.0
    %321 = vmatpush1.msra.mxu0 0.0
    %322 = vmatprep.subr.mxu0 0.0
    %323 = vmatpush1.msra.mxu0 0.0
    %324 = vmatprep.subr.mxu0 0.0
    %325 = vmatpush1.msra.mxu0 0.0
    %326 = vmatprep.subr.mxu0 0.0
    %327 = vmatpush1.msra.mxu0 0.0
    %328 = vmatprep.subr.mxu0 0.0
    %329 = vmatpush1.msra.mxu0 0.0
    %330 = vmatprep.subr.mxu0 0.0
    %331 = vmatpush1.msra.mxu0 0.0
    %332 = vmatprep.subr.mxu0 0.0
    %333 = vmatpush1.msra.mxu0 0.0
    %334 = vmatprep.subr.mxu0 0.0
    %335 = vmatpush1.msra.mxu0 0.0
    %336 = vmatprep.subr.mxu0 0.0
    %337 = vmatpush1.msra.mxu0 0.0
    %338 = vmatprep.subr.mxu0 0.0
    %339 = vmatpush1.msra.mxu0 0.0
    %340 = vmatprep.subr.mxu0 0.0
    %341 = vmatpush1.msra.mxu0 0.0
    %342 = vmatprep.subr.mxu0 0.0
    %343 = vmatpush1.msra.mxu0 0.0
    %344 = vmatprep.subr.mxu0 0.0
    %345 = vmatpush1.msra.mxu0 0.0
    %346 = vmatprep.mubr.f32.mxu0 0.0
    %347 = vmatmul.mubr.f32.gmra.mrb[0].mxu0 %v277
    %v348 = vpop.f32.mrb[0].mxu0
    %v349 = vadd.f32 %v274, %v348
    %v350 = vpop.f32.mrb[0].mxu0
    %351 = vmatprep.mubr.f32.mxu0 0.0
    %352 = vmatmul.mubr.f32.gmra.mrb[0].mxu0 %v280
    %v353 = vpop.f32.mrb[0].mxu0
    %v354 = vadd.f32 %v274, %v353
    %v355 = vpop.f32.mrb[0].mxu0
    %356 = vdwg.mxu0
    %357 = vst.msk [vmem:[#allocation10] sm:$0xff] %vm95, %v349
    %358 = vst.msk [vmem:[#allocation10 + $0x8] sm:$0xff] %vm95, %v354
    // Predicated region
    $region46: #{tpu_custom_call.1} parent=1 // pred_check
      _
    $region47: #{tpu_custom_call.1} parent=1 // pred_check_branch
      %360 = sbr.rel (0) target = $region49
    $region48: #{tpu_custom_call.1} parent=1 // pred_region
      %s362 = ssub.s32 256, 256
      %363 = vsyncadd [#allocation4], %s362
      %s364 = sshll.u32 [#allocation10], 4
      %s365 = int_to_ptr.vmem [resolvable:$true] %s364
      %370 = dma.vmem_to_hbm [thread:$0]  %s365, 256, %s7, [#allocation4], 128, 128, 8
    $region49: #{tpu_custom_call.1} parent=1 // pred_fallthru
      _
    // Predicated region
    $region50: #{tpu_custom_call.1} parent=1 // pred_check
      _
    $region51: #{tpu_custom_call.1} parent=1 // pred_check_branch
      %372 = sbr.rel (0) target = $region53
    $region52: #{tpu_custom_call.1} parent=1 // pred_region
      %373 = dma.done [#allocation4], 256
    $region53: #{tpu_custom_call.1} parent=1 // pred_fallthru
      _
    %374 = vsyncpa [#allocation3], 1
    %375 = vsyncpa [#allocation6], 1
    %376 = vsyncpa [#allocation9], 1
    %377 = vsyncpa [#allocation4], 1

</llo_original>
